<compile_context>
chip_gen: v7x
topology: tpu7x:2x2x1
jax: 0.10.0
libtpu: 0.0.40
codegen_flags: <defaults>
</compile_context>

<pallas_src>
import numpy as np
import jax
import jax.numpy as jnp
from jax import lax
from jax.experimental import pallas as pl
from jax.experimental.pallas import tpu as pltpu

# ---------------- config (small shapes consistent with the module) ----------------
N, CIN, H, W = 2, 4, 16, 16          # input  (NCHW)
COUT, K = 8, 3                       # original Conv2d(CIN, COUT, K)
STRIDE, PAD, DIL = 1, 1, 1
RIN, ROUT = 2, 4                     # tucker ranks
SPARSE_RATIO = 0.3
CKK = CIN * K * K                    # im2col patch length (c*K*K + kh*K + kw order)
HO = (H + 2 * PAD - DIL * (K - 1) - 1) // STRIDE + 1
WO = (W + 2 * PAD - DIL * (K - 1) - 1) // STRIDE + 1


# ---------------- sparse weight construction (replicates the PyTorch helpers) ------
def to_sparsity_ratio(matrix, sparsity_ratio):
    column_vector = matrix.ravel()
    sort_s = np.sort(np.abs(column_vector))
    idx = round(len(sort_s) * (1 - sparsity_ratio))
    idx = min(idx, sort_s.size - 1)   # guard (original PyTorch can index OOB as ratio->0)
    bp = sort_s[idx]
    return np.sign(matrix) * np.maximum(np.abs(matrix) - bp, 0)


def get_sparse_weight(shape, sparse_ratio, seed=1):
    rng = np.random.default_rng(seed)
    s_shape = (shape[0], shape[1] * shape[2] * shape[3])
    random_matrix = rng.standard_normal(s_shape)
    s = to_sparsity_ratio(random_matrix, sparse_ratio)
    mask = np.where(s == 0, 0.0, 1.0)
    s_weights = (s * mask).reshape(shape)      # s * mask == s, kept for semantic fidelity
    return jnp.asarray(s_weights, jnp.float32)


# ---------------- static parameter fold (done once, at init time) ------------------
def fold_params(w_down, w_core, w_up, bias, w_sparse):
    """tucker chain + sparse branch -> single (COUT, CKK+1) weight (bias in last column)."""
    w_eff = jnp.einsum('or,rikl,ic->ockl',
                       w_up.reshape(COUT, ROUT),
                       w_core,
                       w_down.reshape(RIN, CIN))            # (COUT, CIN, K, K)
    w_total = (w_eff + w_sparse).reshape(COUT, CKK)          # OIHW flatten: c*K*K + kh*K + kw
    w_aug = jnp.concatenate([w_total, bias.reshape(COUT, 1)], axis=1)  # (COUT, CKK+1)
    return w_aug.astype(jnp.float32)


# ---------------- Pallas kernel: fused per-batch matmul (bias folded) --------------
def _fused_conv_kernel(w_ref, p_ref, o_ref):
    # w_ref: (COUT, CKK+1)        folded tucker + sparse weight, bias in last column
    # p_ref: (N, CKK+1, Ho*Wo)    transposed im2col patches, last row = ones
    # o_ref: (N, COUT, Ho*Wo)     lane-dense output (256 lanes)
    w = w_ref[...]
    for n in range(o_ref.shape[0]):                     # static, N = 2
        o_ref[n] = jnp.dot(w, p_ref[n], preferred_element_type=jnp.float32)


# ---------------- forward (fully jitted; no wrapper transposes) ---------------------
@jax.jit
def combined_layer_forward(x_nchw, w_aug):
    n = x_nchw.shape[0]
    x = x_nchw.astype(jnp.float32)
    xp = jnp.pad(x, ((0, 0), (0, 0), (PAD, PAD), (PAD, PAD)))     # (N, C, Hp, Wp)

    # Transposed im2col: tap axis stacked between C and spatial so the row index is
    # c*K*K + kh*K + kw (matches the OIHW weight flatten) and Ho*Wo stays minor.
    taps = []
    for kh in range(K):
        for kw in range(K):
            taps.append(xp[:, :,
                           kh * DIL: kh * DIL + STRIDE * (HO - 1) + 1: STRIDE,
                           kw * DIL: kw * DIL + STRIDE * (WO - 1) + 1: STRIDE])
    patches = jnp.stack(taps, axis=2)                              # (N, C, K*K, Ho, Wo)
    patches = patches.reshape(n, CKK, HO * WO)                     # (N, CKK, Ho*Wo)
    ones_row = jnp.ones((n, 1, HO * WO), jnp.float32)
    p_aug = jnp.concatenate([patches, ones_row], axis=1)           # (N, CKK+1, Ho*Wo)

    out = pl.pallas_call(
        _fused_conv_kernel,
        out_shape=jax.ShapeDtypeStruct((n, COUT, HO * WO), jnp.float32),
        in_specs=[pl.BlockSpec(memory_space=pltpu.MemorySpace.VMEM),
                  pl.BlockSpec(memory_space=pltpu.MemorySpace.VMEM)],
        out_specs=pl.BlockSpec(memory_space=pltpu.MemorySpace.VMEM),
    )(w_aug, p_aug)

    return out.reshape(n, COUT, HO, WO)                            # pure reshape, NCHW


# ---------------- reference (pure JAX) for a correctness check ----------------------
def ref_forward(x, params):
    w_down, w_core, w_up, bias, w_sparse = params
    dn = ('NCHW', 'OIHW', 'NCHW')
    y = lax.conv_general_dilated(x, w_down, (1, 1), 'VALID', dimension_numbers=dn)
    y = lax.conv_general_dilated(y, w_core, (STRIDE, STRIDE), [(PAD, PAD), (PAD, PAD)],
                                 rhs_dilation=(DIL, DIL), dimension_numbers=dn)
    y = lax.conv_general_dilated(y, w_up, (1, 1), 'VALID', dimension_numbers=dn)
    y = y + bias.reshape(1, COUT, 1, 1)
    x2 = lax.conv_general_dilated(x, w_sparse, (STRIDE, STRIDE), [(PAD, PAD), (PAD, PAD)],
                                  rhs_dilation=(DIL, DIL), dimension_numbers=dn)
    return x2 + y


if __name__ == "__main__":
    key = jax.random.PRNGKey(0)
    kx, k1, k2, k3, k4 = jax.random.split(key, 5)

    x = jax.random.normal(kx, (N, CIN, H, W), dtype=jnp.float32)

    # deterministic tucker-factor weights
    w_down = 0.1 * jax.random.normal(k1, (RIN, CIN, 1, 1), dtype=jnp.float32)
    w_core = 0.1 * jax.random.normal(k2, (ROUT, RIN, K, K), dtype=jnp.float32)
    w_up = 0.1 * jax.random.normal(k3, (COUT, ROUT, 1, 1), dtype=jnp.float32)
    bias = 0.1 * jax.random.normal(k4, (COUT,), dtype=jnp.float32)

    # deterministic sparse-branch weights (s_weights * mask)
    w_sparse = get_sparse_weight((COUT, CIN, K, K), SPARSE_RATIO, seed=1)

    # one-time static fold (not part of the per-call forward)
    w_aug = jax.block_until_ready(fold_params(w_down, w_core, w_up, bias, w_sparse))

    out = combined_layer_forward(x, w_aug)
    out = jax.block_until_ready(out)

    ref = ref_forward(x, (w_down, w_core, w_up, bias, w_sparse))
    assert out.shape == (N, COUT, H, W)
    np.testing.assert_allclose(np.asarray(out), np.asarray(ref), rtol=1e-4, atol=1e-4)

    print("KERNEL_OK")
</pallas_src>

<mosaic_0001>
module attributes {stable_mosaic.version = 11 : i64} {
  func.func @_fused_conv_kernel(%arg0: memref<8x37xf32, #tpu.memory_space<vmem>>, %arg1: memref<2x37x256xf32, #tpu.memory_space<vmem>>, %arg2: memref<2x8x256xf32, #tpu.memory_space<vmem>>) attributes {dimension_semantics = [], scalar_prefetch = 0 : i64, scratch_operands = 0 : i64, tpu.core_type = #tpu.core_type<tc>} {
    %c0 = arith.constant 0 : index
    %c0_0 = arith.constant 0 : index
    %0 = vector.load %arg0[%c0, %c0_0] : memref<8x37xf32, #tpu.memory_space<vmem>>, vector<8x37xf32>
    %c0_1 = arith.constant 0 : index
    %c0_2 = arith.constant 0 : index
    %c0_3 = arith.constant 0 : index
    %1 = vector.load %arg1[%c0_1, %c0_2, %c0_3] : memref<2x37x256xf32, #tpu.memory_space<vmem>>, vector<1x37x256xf32>
    %2 = vector.shape_cast %1 : vector<1x37x256xf32> to vector<37x256xf32>
    %cst = arith.constant dense<0.000000e+00> : vector<8x256xf32>
    %3 = tpu.matmul %0, %2, %cst {dimension_numbers = #tpu.dot_dimension_numbers<[1], [0], [0], [1], [0, 0, 1, 1], [], []>} : vector<8x37xf32>, vector<37x256xf32>, vector<8x256xf32> -> vector<8x256xf32>
    %c0_4 = arith.constant 0 : index
    %c0_5 = arith.constant 0 : index
    %c0_6 = arith.constant 0 : index
    %4 = vector.load %arg2[%c0_4, %c0_5, %c0_6] : memref<2x8x256xf32, #tpu.memory_space<vmem>>, vector<1x8x256xf32>
    %5 = vector.shape_cast %4 : vector<1x8x256xf32> to vector<8x256xf32>
    %6 = vector.shape_cast %3 : vector<8x256xf32> to vector<1x8x256xf32>
    tpu.vector_store %arg2[%c0_4, %c0_5, %c0_6], %6 {strides = array<i32>} : memref<2x8x256xf32, #tpu.memory_space<vmem>>, vector<1x8x256xf32>,
    %c1 = arith.constant 1 : index
    %c0_7 = arith.constant 0 : index
    %c0_8 = arith.constant 0 : index
    %7 = vector.load %arg1[%c1, %c0_7, %c0_8] : memref<2x37x256xf32, #tpu.memory_space<vmem>>, vector<1x37x256xf32>
    %8 = vector.shape_cast %7 : vector<1x37x256xf32> to vector<37x256xf32>
    %cst_9 = arith.constant dense<0.000000e+00> : vector<8x256xf32>
    %9 = tpu.matmul %0, %8, %cst_9 {dimension_numbers = #tpu.dot_dimension_numbers<[1], [0], [0], [1], [0, 0, 1, 1], [], []>} : vector<8x37xf32>, vector<37x256xf32>, vector<8x256xf32> -> vector<8x256xf32>
    %c1_10 = arith.constant 1 : index
    %c0_11 = arith.constant 0 : index
    %c0_12 = arith.constant 0 : index
    %10 = vector.load %arg2[%c1_10, %c0_11, %c0_12] : memref<2x8x256xf32, #tpu.memory_space<vmem>>, vector<1x8x256xf32>
    %11 = vector.shape_cast %10 : vector<1x8x256xf32> to vector<8x256xf32>
    %12 = vector.shape_cast %9 : vector<8x256xf32> to vector<1x8x256xf32>
    tpu.vector_store %arg2[%c1_10, %c0_11, %c0_12], %12 {strides = array<i32>} : memref<2x8x256xf32, #tpu.memory_space<vmem>>, vector<1x8x256xf32>,
    return
  }
}

</mosaic_0001>

<llo_original>
// kernel: combined_layer_forward.1
$region0: #{combined_layer_forward.1}
  #allocation0 [shape = 'u32[]', space=smem, size = 0x4, offset = 0x4, fixed_abs, tag = 'smem constant byte address 0x4 - core index']
  #allocation1 [shape = 'u32[144,128]{1,0:T(1,128)}', space=vmem, size = 0x12000, scoped, tag = 'internal scratch']
  %s0 = inlined_call_operand.vmem [shape: f32[8,37], index: 0, kind: input, shape index: {}]
  %s1 = inlined_call_operand.vmem [shape: f32[2,37,256], index: 1, kind: input, shape index: {}]
  %s2 = inlined_call_operand.vmem [shape: f32[2,8,256], index: 2, kind: output, shape index: {}]
  %s3 = sld [smem:[#allocation0]]
  $region18: #{combined_layer_forward.1} parent=0
    _
  %s5 = ssub.s32 1, %s3
  %s6 = scalar_select 0, %s5, %s3
  // Predicated region
  $region2: #{combined_layer_forward.1} parent=0 // pred_check
    _
  $region3: #{combined_layer_forward.1} parent=0 // pred_check_branch
    %8 = sbr.rel (0) target = $region5
  $region4: #{combined_layer_forward.1} parent=0 // pred_region
    _
  $region5: #{combined_layer_forward.1} parent=0 // pred_fallthru
    _
  // Predicated region
  $region6: #{combined_layer_forward.1} parent=0 // pred_check
    _
  $region7: #{combined_layer_forward.1} parent=0 // pred_check_branch
    %10 = sbr.rel (0) target = $region9
  $region8: #{combined_layer_forward.1} parent=0 // pred_region
    _
  $region9: #{combined_layer_forward.1} parent=0 // pred_fallthru
    _
  %v11 = vld [vmem:[%s0] sm:$0xff]
  %v12 = vld [vmem:[%s1] sm:$0xff]
  %v13 = vld [vmem:[%s1 + $0x8] sm:$0xff]
  %v14 = vld [vmem:[%s1 + $0x10] sm:$0xff]
  %v15 = vld [vmem:[%s1 + $0x18] sm:$0xff]
  %v16 = vld [vmem:[%s1 + $0x20] sm:$0xff]
  %v17 = vld [vmem:[%s1 + $0x28] sm:$0xff]
  %v18 = vld [vmem:[%s1 + $0x30] sm:$0xff]
  %v19 = vld [vmem:[%s1 + $0x38] sm:$0xff]
  %v20 = vld [vmem:[%s1 + $0x40] sm:$0x1f]
  %v21 = vld [vmem:[%s1 + $0x48] sm:$0x1f]
  %vm22 = vcmask 302080
  %v24 = vsel %vm22, %v11, 0
  %vm26 = vcmask 1044480
  %v28 = vsel %vm26, %v20, 0
  %v31 = vsel %vm26, %v21, 0
  %33 = vmatprep.subr.mxu0 %v13
  %34 = vmatpush1.msra.mxu0 %v12
  %35 = vmatprep.subr.mxu0 %v15
  %36 = vmatpush1.msra.mxu0 %v14
  %37 = vmatprep.subr.mxu0 %v17
  %38 = vmatpush1.msra.mxu0 %v16
  %39 = vmatprep.subr.mxu0 %v19
  %40 = vmatpush1.msra.mxu0 %v18
  %41 = vmatprep.subr.mxu0 %v31
  %42 = vmatpush1.msra.mxu0 %v28
  %43 = vmatprep.subr.mxu0 0.0
  %44 = vmatpush1.msra.mxu0 0.0
  %45 = vmatprep.subr.mxu0 0.0
  %46 = vmatpush1.msra.mxu0 0.0
  %47 = vmatprep.subr.mxu0 0.0
  %48 = vmatpush1.msra.mxu0 0.0
  %49 = vmatprep.subr.mxu0 0.0
  %50 = vmatpush1.msra.mxu0 0.0
  %51 = vmatprep.subr.mxu0 0.0
  %52 = vmatpush1.msra.mxu0 0.0
  %53 = vmatprep.subr.mxu0 0.0
  %54 = vmatpush1.msra.mxu0 0.0
  %55 = vmatprep.subr.mxu0 0.0
  %56 = vmatpush1.msra.mxu0 0.0
  %57 = vmatprep.subr.mxu0 0.0
  %58 = vmatpush1.msra.mxu0 0.0
  %59 = vmatprep.subr.mxu0 0.0
  %60 = vmatpush1.msra.mxu0 0.0
  %61 = vmatprep.subr.mxu0 0.0
  %62 = vmatpush1.msra.mxu0 0.0
  %63 = vmatprep.subr.mxu0 0.0
  %64 = vmatpush1.msra.mxu0 0.0
  %65 = vmatprep.subr.mxu0 0.0
  %66 = vmatpush1.msra.mxu0 0.0
  %67 = vmatprep.subr.mxu0 0.0
  %68 = vmatpush1.msra.mxu0 0.0
  %69 = vmatprep.subr.mxu0 0.0
  %70 = vmatpush1.msra.mxu0 0.0
  %71 = vmatprep.subr.mxu0 0.0
  %72 = vmatpush1.msra.mxu0 0.0
  %73 = vmatprep.subr.mxu0 0.0
  %74 = vmatpush1.msra.mxu0 0.0
  %75 = vmatprep.subr.mxu0 0.0
  %76 = vmatpush1.msra.mxu0 0.0
  %77 = vmatprep.subr.mxu0 0.0
  %78 = vmatpush1.msra.mxu0 0.0
  %79 = vmatprep.subr.mxu0 0.0
  %80 = vmatpush1.msra.mxu0 0.0
  %81 = vmatprep.subr.mxu0 0.0
  %82 = vmatpush1.msra.mxu0 0.0
  %83 = vmatprep.subr.mxu0 0.0
  %84 = vmatpush1.msra.mxu0 0.0
  %85 = vmatprep.subr.mxu0 0.0
  %86 = vmatpush1.msra.mxu0 0.0
  %87 = vmatprep.subr.mxu0 0.0
  %88 = vmatpush1.msra.mxu0 0.0
  %89 = vmatprep.subr.mxu0 0.0
  %90 = vmatpush1.msra.mxu0 0.0
  %91 = vmatprep.subr.mxu0 0.0
  %92 = vmatpush1.msra.mxu0 0.0
  %93 = vmatprep.subr.mxu0 0.0
  %94 = vmatpush1.msra.mxu0 0.0
  %95 = vmatprep.subr.mxu0 0.0
  %96 = vmatpush1.msra.mxu0 0.0
  %97 = vmatprep.mubr.f32.mxu0 0.0
  %98 = vmatmul.mubr.f32.gmra.mrb[0].mxu0 %v24
  %v99 = vpop.f32.mrb[0].mxu0
  %v100 = vadd.f32 0.0, %v99
  %v101 = vpop.f32.mrb[0].mxu0
  %v102 = vadd.f32 0.0, %v101
  %103 = vdwg.mxu0
  %104 = vst [vmem:[%s2] sm:$0xff] %v100
  %105 = vst [vmem:[%s2 + $0x8] sm:$0xff] %v102
  %s106 = scalar_lea.vmem %s1, 80
  %v107 = vld [vmem:[%s106] sm:$0xff]
  %v108 = vld [vmem:[%s106 + $0x8] sm:$0xff]
  %v109 = vld [vmem:[%s106 + $0x10] sm:$0xff]
  %v110 = vld [vmem:[%s106 + $0x18] sm:$0xff]
  %v111 = vld [vmem:[%s106 + $0x20] sm:$0xff]
  %v112 = vld [vmem:[%s106 + $0x28] sm:$0xff]
  %v113 = vld [vmem:[%s106 + $0x30] sm:$0xff]
  %v114 = vld [vmem:[%s106 + $0x38] sm:$0xff]
  %v115 = vld [vmem:[%s106 + $0x40] sm:$0x1f]
  %v116 = vld [vmem:[%s106 + $0x48] sm:$0x1f]
  %v118 = vsel %vm26, %v115, 0
  %v121 = vsel %vm26, %v116, 0
  %123 = vmatprep.subr.mxu0 %v108
  %124 = vmatpush1.msra.mxu0 %v107
  %125 = vmatprep.subr.mxu0 %v110
  %126 = vmatpush1.msra.mxu0 %v109
  %127 = vmatprep.subr.mxu0 %v112
  %128 = vmatpush1.msra.mxu0 %v111
  %129 = vmatprep.subr.mxu0 %v114
  %130 = vmatpush1.msra.mxu0 %v113
  %131 = vmatprep.subr.mxu0 %v121
  %132 = vmatpush1.msra.mxu0 %v118
  %133 = vmatprep.subr.mxu0 0.0
  %134 = vmatpush1.msra.mxu0 0.0
  %135 = vmatprep.subr.mxu0 0.0
  %136 = vmatpush1.msra.mxu0 0.0
  %137 = vmatprep.subr.mxu0 0.0
  %138 = vmatpush1.msra.mxu0 0.0
  %139 = vmatprep.subr.mxu0 0.0
  %140 = vmatpush1.msra.mxu0 0.0
  %141 = vmatprep.subr.mxu0 0.0
  %142 = vmatpush1.msra.mxu0 0.0
  %143 = vmatprep.subr.mxu0 0.0
  %144 = vmatpush1.msra.mxu0 0.0
  %145 = vmatprep.subr.mxu0 0.0
  %146 = vmatpush1.msra.mxu0 0.0
  %147 = vmatprep.subr.mxu0 0.0
  %148 = vmatpush1.msra.mxu0 0.0
  %149 = vmatprep.subr.mxu0 0.0
  %150 = vmatpush1.msra.mxu0 0.0
  %151 = vmatprep.subr.mxu0 0.0
  %152 = vmatpush1.msra.mxu0 0.0
  %153 = vmatprep.subr.mxu0 0.0
  %154 = vmatpush1.msra.mxu0 0.0
  %155 = vmatprep.subr.mxu0 0.0
  %156 = vmatpush1.msra.mxu0 0.0
  %157 = vmatprep.subr.mxu0 0.0
  %158 = vmatpush1.msra.mxu0 0.0
  %159 = vmatprep.subr.mxu0 0.0
  %160 = vmatpush1.msra.mxu0 0.0
  %161 = vmatprep.subr.mxu0 0.0
  %162 = vmatpush1.msra.mxu0 0.0
  %163 = vmatprep.subr.mxu0 0.0
  %164 = vmatpush1.msra.mxu0 0.0
  %165 = vmatprep.subr.mxu0 0.0
  %166 = vmatpush1.msra.mxu0 0.0
  %167 = vmatprep.subr.mxu0 0.0
  %168 = vmatpush1.msra.mxu0 0.0
  %169 = vmatprep.subr.mxu0 0.0
  %170 = vmatpush1.msra.mxu0 0.0
  %171 = vmatprep.subr.mxu0 0.0
  %172 = vmatpush1.msra.mxu0 0.0
  %173 = vmatprep.subr.mxu0 0.0
  %174 = vmatpush1.msra.mxu0 0.0
  %175 = vmatprep.subr.mxu0 0.0
  %176 = vmatpush1.msra.mxu0 0.0
  %177 = vmatprep.subr.mxu0 0.0
  %178 = vmatpush1.msra.mxu0 0.0
  %179 = vmatprep.subr.mxu0 0.0
  %180 = vmatpush1.msra.mxu0 0.0
  %181 = vmatprep.subr.mxu0 0.0
  %182 = vmatpush1.msra.mxu0 0.0
  %183 = vmatprep.subr.mxu0 0.0
  %184 = vmatpush1.msra.mxu0 0.0
  %185 = vmatprep.subr.mxu0 0.0
  %186 = vmatpush1.msra.mxu0 0.0
  %187 = vmatprep.mubr.f32.mxu0 0.0
  %188 = vmatmul.mubr.f32.gmra.mrb[0].mxu0 %v24
  %v189 = vpop.f32.mrb[0].mxu0
  %v190 = vadd.f32 0.0, %v189
  %v191 = vpop.f32.mrb[0].mxu0
  %v192 = vadd.f32 0.0, %v191
  %193 = vdwg.mxu0
  %s194 = scalar_lea.vmem %s2, 16
  %195 = vst [vmem:[%s194] sm:$0xff] %v190
  %196 = vst [vmem:[%s194 + $0x8] sm:$0xff] %v192
  // Predicated region
  $region10: #{combined_layer_forward.1} parent=0 // pred_check
    _
  $region11: #{combined_layer_forward.1} parent=0 // pred_check_branch
    %198 = sbr.rel (0) target = $region13
  $region12: #{combined_layer_forward.1} parent=0 // pred_region
    _
  $region13: #{combined_layer_forward.1} parent=0 // pred_fallthru
    _
  // Predicated region
  $region14: #{combined_layer_forward.1} parent=0 // pred_check
    _
  $region15: #{combined_layer_forward.1} parent=0 // pred_check_branch
    %200 = sbr.rel (0) target = $region17
  $region16: #{combined_layer_forward.1} parent=0 // pred_region
    _
  $region17: #{combined_layer_forward.1} parent=0 // pred_fallthru
    _

</llo_original>
